<compile_context>
chip_gen: v6e
topology: v6e:2x2x1
jax: 0.10.0
libtpu: 0.0.40
codegen_flags: <defaults>
</compile_context>

<pallas_src>
import functools

import jax
import jax.numpy as jnp
from jax.experimental import pallas as pl
from jax.experimental.pallas import tpu as pltpu

# Fixed "weights" from TVLoss.__init__ (kept verbatim from the PyTorch module).
_KA = ((-1.0, 0.0, -1.0),
       (-2.0, 0.0,  2.0),
       (-1.0, 0.0,  1.0))
_KB = ((-1.0, -2.0, -1.0),
       ( 0.0,  0.0,  0.0),
       ( 1.0,  2.0,  1.0))


def _tv_kernel(x_ref, out_ref, *, width, rows_per_lane):
    """One grid step: partial TV sum for a block of images.

    x_ref:   (Bt, G, L) block with L = rows_per_lane * width.  Packed row g
             holds `rows_per_lane` consecutive image rows side by side along
             the lane axis (lane l <-> image row g*rp + l//W, column l % W).
    out_ref: (1, 1) SMEM partial sum for this block.
    """
    W = width
    rp = rows_per_lane
    x = x_ref[...].astype(jnp.float32)      # compute in f32; bf16 stays on the wire
    Bt, G, L = x.shape

    lane = jax.lax.broadcasted_iota(jnp.int32, (Bt, G, L), 2)
    col = lane % W                          # image column carried by each lane

    def rot(a, k):
        # Lane rotation: out[..., l] = a[..., (l - k) % L].
        # L-aligned self-concat + static lane slice (robust lane "roll").
        k = k % L
        if k == 0:
            return a
        aa = jnp.concatenate([a, a], axis=2)
        return aa[..., L - k:2 * L - k]

    def g_down(a):
        # Previous packed row (zero row above the top): out[:, g] = a[:, g-1].
        if G == 1:
            return jnp.zeros_like(a)
        return jnp.concatenate(
            [jnp.zeros((Bt, 1, L), jnp.float32), a[:, :G - 1, :]], axis=1)

    def g_up(a):
        # Next packed row (zero row below the bottom): out[:, g] = a[:, g+1].
        if G == 1:
            return jnp.zeros_like(a)
        return jnp.concatenate(
            [a[:, 1:, :], jnp.zeros((Bt, 1, L), jnp.float32)], axis=1)

    def row_prev(a):
        # Value of `a` one *image* row up, zero-padded above image row 0.
        if rp == 1:
            return g_down(a)
        r = rot(a, W)                                   # previous lane segment
        return jnp.where(lane < W, g_down(r), r)        # seg 0 -> previous packed row

    def row_next(a):
        # Value of `a` one *image* row down, zero-padded below image row H-1.
        if rp == 1:
            return g_up(a)
        r = rot(a, -W)                                  # next lane segment
        return jnp.where(lane >= L - W, g_up(r), r)     # last seg -> next packed row

    # Hoisted column shifts with the zero "padding=1" border on the lane axis.
    c_prev = jnp.where(col == 0, 0.0, rot(x, 1))        # x[r, c-1]
    c_next = jnp.where(col == W - 1, 0.0, rot(x, -1))   # x[r, c+1]

    u = c_prev + c_next
    d = c_next - c_prev
    h = u + 2.0 * x                                     # [1, 2, 1] horizontal tap

    # KA = [[-1,0,-1],[-2,0,2],[-1,0,1]] -> gx ;  KB = [[-1,-2,-1],[0,0,0],[1,2,1]] -> gy
    gx = 2.0 * d + row_next(d) - row_prev(u)
    gy = row_next(h) - row_prev(h)

    tv = jnp.sqrt(gx * gx + gy * gy)
    out_ref[0, 0] = jnp.sum(tv)


def tv_loss(signal, *, block_images=None):
    """signal: (N, 1, H, W) float/bfloat array. Returns scalar mean TV loss (f32)."""
    N, C, H, W = signal.shape
    assert C == 1, "TVLoss conv kernel is (1,1,3,3): input must have 1 channel"

    # Lane packing: group `rp` consecutive image rows onto the lane axis so the
    # last dim is (close to) 128 wide.  Row-major regroup of trailing dims =>
    # free reshape, no extra HBM pass.
    if W < 128 and 128 % W == 0:
        rp = 128 // W
        while rp > 1 and H % rp:
            rp //= 2
    else:
        rp = 1
    G, L = H // rp, rp * W
    x = signal.reshape(N, G, L)

    # Images per grid step: ~1 MiB (f32-equivalent) input block keeps DMAs big
    # and per-step overhead amortized, while f32 temporaries stay well under
    # the 32 MiB scoped-VMEM default (v7x has 64 MiB physical).
    if block_images is None:
        bt = max(1, min(N, (1 << 20) // (H * W * 4)))
    else:
        bt = max(1, min(int(block_images), N))
    while N % bt:
        bt -= 1
    nblk = N // bt
    # TODO(synk): for very large single images (H*W*4 >> a few MiB) add row-strip
    # tiling with a 1-row halo so one block still fits v7x's 64 MiB VMEM.

    kernel = functools.partial(_tv_kernel, width=W, rows_per_lane=rp)
    partials = pl.pallas_call(
        kernel,
        out_shape=jax.ShapeDtypeStruct((nblk, 1), jnp.float32),
        grid=(nblk,),
        in_specs=[pl.BlockSpec((bt, G, L), lambda i: (i, 0, 0))],
        out_specs=pl.BlockSpec((1, 1), lambda i: (i, 0),
                               memory_space=pltpu.SMEM),
        compiler_params=pltpu.CompilerParams(
            dimension_semantics=("parallel",)),
    )(x)

    return jnp.sum(partials) / jnp.float32(N * C * H * W)


def _reference(signal):
    """Pure-JAX reference (lax.conv) replicating the PyTorch forward."""
    ka = jnp.asarray(_KA, jnp.float32).reshape(1, 1, 3, 3)
    kb = jnp.asarray(_KB, jnp.float32).reshape(1, 1, 3, 3)
    x = signal.astype(jnp.float32)
    dn = jax.lax.conv_dimension_numbers(x.shape, ka.shape,
                                        ("NCHW", "OIHW", "NCHW"))
    gx = jax.lax.conv_general_dilated(x, ka, (1, 1), ((1, 1), (1, 1)),
                                      dimension_numbers=dn)
    gy = jax.lax.conv_general_dilated(x, kb, (1, 1), ((1, 1), (1, 1)),
                                      dimension_numbers=dn)
    return jnp.mean(jnp.sqrt(gx ** 2 + gy ** 2))


if __name__ == "__main__":
    key = jax.random.PRNGKey(0)
    k1, k2, k3 = jax.random.split(key, 3)

    cases = [
        ("f32 16x16 single-block",
         jax.random.normal(k1, (4, 1, 16, 16), jnp.float32), None),
        ("f32 32x32 multi-block (parallel grid)",
         jax.random.normal(k2, (16, 1, 32, 32), jnp.float32), 4),
        ("bf16 on the HBM wire",
         jax.random.normal(k3, (8, 1, 16, 16), jnp.float32).astype(jnp.bfloat16),
         None),
    ]
    for name, xin, blk in cases:
        out = jax.block_until_ready(tv_loss(xin, block_images=blk))
        ref = jax.block_until_ready(_reference(xin))
        assert jnp.allclose(out, ref, rtol=1e-4, atol=1e-5), (name, float(out), float(ref))
    print("KERNEL_OK")
</pallas_src>

<mosaic_0001>
module attributes {stable_mosaic.version = 11 : i64} {
  func.func @_tv_kernel(%arg0: i32, %arg1: memref<4x2x128xf32, #tpu.memory_space<vmem>>, %arg2: memref<1x1xf32, #tpu.memory_space<smem>>) attributes {dimension_semantics = [#tpu.dimension_semantics<parallel>], iteration_bounds = array<i64: 1>, scalar_prefetch = 0 : i64, scratch_operands = 0 : i64, tpu.core_type = #tpu.core_type<tc>, window_params = [{transform_indices = @transform_0, window_bounds = array<i64: 4, 2, 128>}, {transform_indices = @transform_1, window_bounds = array<i64: 1, 1>}]} {
    %c0 = arith.constant 0 : index
    %c0_0 = arith.constant 0 : index
    %c0_1 = arith.constant 0 : index
    %0 = vector.load %arg1[%c0, %c0_0, %c0_1] : memref<4x2x128xf32, #tpu.memory_space<vmem>>, vector<4x2x128xf32>
    %1 = tpu.iota {dimensions = array<i32: 2>} : vector<4x2x128xi32>
    %c16_i32 = arith.constant 16 : i32
    %c0_i32 = arith.constant 0 : i32
    %2 = arith.cmpi eq, %c16_i32, %c0_i32 : i32
    %c1_i32 = arith.constant 1 : i32
    %3 = arith.select %2, %c1_i32, %c16_i32 : i32
    %4 = vector.broadcast %3 : i32 to vector<4x2x128xi32>
    %5 = arith.remsi %1, %4 : vector<4x2x128xi32>
    %c0_i32_2 = arith.constant 0 : i32
    %6 = vector.broadcast %c0_i32_2 : i32 to vector<4x2x128xi32>
    %7 = arith.cmpi ne, %5, %6 : vector<4x2x128xi32>
    %c0_i32_3 = arith.constant 0 : i32
    %8 = vector.broadcast %c0_i32_3 : i32 to vector<4x2x128xi32>
    %9 = arith.cmpi slt, %5, %8 : vector<4x2x128xi32>
    %c0_i32_4 = arith.constant 0 : i32
    %10 = arith.cmpi slt, %3, %c0_i32_4 : i32
    %11 = vector.broadcast %10 : i1 to vector<4x2x128xi1>
    %12 = vector.broadcast %11 : vector<4x2x128xi1> to vector<4x2x128xi1>
    %13 = arith.xori %9, %12 : vector<4x2x128xi1>
    %14 = arith.andi %13, %7 : vector<4x2x128xi1>
    %15 = vector.broadcast %3 : i32 to vector<4x2x128xi32>
    %16 = arith.addi %5, %15 : vector<4x2x128xi32>
    %17 = arith.select %14, %16, %5 : vector<4x2x128xi1>, vector<4x2x128xi32>
    %c0_i32_5 = arith.constant 0 : i32
    %18 = vector.broadcast %c0_i32_5 : i32 to vector<4x2x128xi32>
    %19 = arith.cmpi eq, %17, %18 : vector<4x2x128xi32>
    %20 = tpu.concatenate %0, %0 in 2 : vector<4x2x128xf32>, vector<4x2x128xf32> -> vector<4x2x256xf32>
    %21 = vector.extract_strided_slice %20 {offsets = [0, 0, 127], sizes = [4, 2, 128], strides = [1, 1, 1]} : vector<4x2x256xf32> to vector<4x2x128xf32>
    %cst = arith.constant 0.000000e+00 : f32
    %22 = vector.broadcast %cst : f32 to vector<4x2x128xf32>
    %23 = arith.select %19, %22, %21 : vector<4x2x128xi1>, vector<4x2x128xf32>
    %c15_i32 = arith.constant 15 : i32
    %24 = vector.broadcast %c15_i32 : i32 to vector<4x2x128xi32>
    %25 = arith.cmpi eq, %17, %24 : vector<4x2x128xi32>
    %26 = tpu.concatenate %0, %0 in 2 : vector<4x2x128xf32>, vector<4x2x128xf32> -> vector<4x2x256xf32>
    %27 = vector.extract_strided_slice %26 {offsets = [0, 0, 1], sizes = [4, 2, 128], strides = [1, 1, 1]} : vector<4x2x256xf32> to vector<4x2x128xf32>
    %cst_6 = arith.constant 0.000000e+00 : f32
    %28 = vector.broadcast %cst_6 : f32 to vector<4x2x128xf32>
    %29 = arith.select %25, %28, %27 : vector<4x2x128xi1>, vector<4x2x128xf32>
    %30 = arith.addf %23, %29 : vector<4x2x128xf32>
    %31 = arith.subf %29, %23 : vector<4x2x128xf32>
    %cst_7 = arith.constant 2.000000e+00 : f32
    %32 = vector.broadcast %cst_7 : f32 to vector<4x2x128xf32>
    %33 = arith.mulf %32, %0 : vector<4x2x128xf32>
    %34 = arith.addf %30, %33 : vector<4x2x128xf32>
    %cst_8 = arith.constant 2.000000e+00 : f32
    %35 = vector.broadcast %cst_8 : f32 to vector<4x2x128xf32>
    %36 = arith.mulf %35, %31 : vector<4x2x128xf32>
    %37 = tpu.concatenate %31, %31 in 2 : vector<4x2x128xf32>, vector<4x2x128xf32> -> vector<4x2x256xf32>
    %38 = vector.extract_strided_slice %37 {offsets = [0, 0, 16], sizes = [4, 2, 128], strides = [1, 1, 1]} : vector<4x2x256xf32> to vector<4x2x128xf32>
    %c112_i32 = arith.constant 112 : i32
    %39 = vector.broadcast %c112_i32 : i32 to vector<4x2x128xi32>
    %40 = arith.cmpi sge, %1, %39 : vector<4x2x128xi32>
    %41 = vector.extract_strided_slice %38 {offsets = [0, 1, 0], sizes = [4, 1, 128], strides = [1, 1, 1]} : vector<4x2x128xf32> to vector<4x1x128xf32>
    %cst_9 = arith.constant 0.000000e+00 : f32
    %42 = vector.broadcast %cst_9 : f32 to vector<4x1x128xf32>
    %43 = tpu.concatenate %41, %42 in 1 : vector<4x1x128xf32>, vector<4x1x128xf32> -> vector<4x2x128xf32>
    %44 = arith.select %40, %43, %38 : vector<4x2x128xi1>, vector<4x2x128xf32>
    %45 = arith.addf %36, %44 : vector<4x2x128xf32>
    %46 = tpu.concatenate %30, %30 in 2 : vector<4x2x128xf32>, vector<4x2x128xf32> -> vector<4x2x256xf32>
    %47 = vector.extract_strided_slice %46 {offsets = [0, 0, 112], sizes = [4, 2, 128], strides = [1, 1, 1]} : vector<4x2x256xf32> to vector<4x2x128xf32>
    %c16_i32_10 = arith.constant 16 : i32
    %48 = vector.broadcast %c16_i32_10 : i32 to vector<4x2x128xi32>
    %49 = arith.cmpi slt, %1, %48 : vector<4x2x128xi32>
    %cst_11 = arith.constant 0.000000e+00 : f32
    %50 = vector.broadcast %cst_11 : f32 to vector<4x1x128xf32>
    %51 = vector.extract_strided_slice %47 {offsets = [0, 0, 0], sizes = [4, 1, 128], strides = [1, 1, 1]} : vector<4x2x128xf32> to vector<4x1x128xf32>
    %52 = tpu.concatenate %50, %51 in 1 : vector<4x1x128xf32>, vector<4x1x128xf32> -> vector<4x2x128xf32>
    %53 = arith.select %49, %52, %47 : vector<4x2x128xi1>, vector<4x2x128xf32>
    %54 = arith.subf %45, %53 : vector<4x2x128xf32>
    %55 = tpu.concatenate %34, %34 in 2 : vector<4x2x128xf32>, vector<4x2x128xf32> -> vector<4x2x256xf32>
    %56 = vector.extract_strided_slice %55 {offsets = [0, 0, 16], sizes = [4, 2, 128], strides = [1, 1, 1]} : vector<4x2x256xf32> to vector<4x2x128xf32>
    %c112_i32_12 = arith.constant 112 : i32
    %57 = vector.broadcast %c112_i32_12 : i32 to vector<4x2x128xi32>
    %58 = arith.cmpi sge, %1, %57 : vector<4x2x128xi32>
    %59 = vector.extract_strided_slice %56 {offsets = [0, 1, 0], sizes = [4, 1, 128], strides = [1, 1, 1]} : vector<4x2x128xf32> to vector<4x1x128xf32>
    %cst_13 = arith.constant 0.000000e+00 : f32
    %60 = vector.broadcast %cst_13 : f32 to vector<4x1x128xf32>
    %61 = tpu.concatenate %59, %60 in 1 : vector<4x1x128xf32>, vector<4x1x128xf32> -> vector<4x2x128xf32>
    %62 = arith.select %58, %61, %56 : vector<4x2x128xi1>, vector<4x2x128xf32>
    %63 = tpu.concatenate %34, %34 in 2 : vector<4x2x128xf32>, vector<4x2x128xf32> -> vector<4x2x256xf32>
    %64 = vector.extract_strided_slice %63 {offsets = [0, 0, 112], sizes = [4, 2, 128], strides = [1, 1, 1]} : vector<4x2x256xf32> to vector<4x2x128xf32>
    %c16_i32_14 = arith.constant 16 : i32
    %65 = vector.broadcast %c16_i32_14 : i32 to vector<4x2x128xi32>
    %66 = arith.cmpi slt, %1, %65 : vector<4x2x128xi32>
    %cst_15 = arith.constant 0.000000e+00 : f32
    %67 = vector.broadcast %cst_15 : f32 to vector<4x1x128xf32>
    %68 = vector.extract_strided_slice %64 {offsets = [0, 0, 0], sizes = [4, 1, 128], strides = [1, 1, 1]} : vector<4x2x128xf32> to vector<4x1x128xf32>
    %69 = tpu.concatenate %67, %68 in 1 : vector<4x1x128xf32>, vector<4x1x128xf32> -> vector<4x2x128xf32>
    %70 = arith.select %66, %69, %64 : vector<4x2x128xi1>, vector<4x2x128xf32>
    %71 = arith.subf %62, %70 : vector<4x2x128xf32>
    %72 = arith.mulf %54, %54 : vector<4x2x128xf32>
    %73 = arith.mulf %71, %71 : vector<4x2x128xf32>
    %74 = arith.addf %72, %73 : vector<4x2x128xf32>
    %75 = math.sqrt %74 : vector<4x2x128xf32>
    %76 = vector.shape_cast %75 : vector<4x2x128xf32> to vector<1x4x2x128xf32>
    %cst_16 = arith.constant dense<0.000000e+00> : vector<1xf32>
    %77 = vector.multi_reduction <add>, %76, %cst_16 [1, 2, 3] : vector<1x4x2x128xf32> to vector<1xf32>
    %78 = vector.shape_cast %77 : vector<1xf32> to vector<1x1x1x1xf32>
    %79 = vector.extract %78[0, 0, 0, 0] : f32 from vector<1x1x1x1xf32>
    %c0_17 = arith.constant 0 : index
    %c0_18 = arith.constant 0 : index
    %80 = memref.load %arg2[%c0_17, %c0_18] : memref<1x1xf32, #tpu.memory_space<smem>>
    memref.store %79, %arg2[%c0_17, %c0_18] : memref<1x1xf32, #tpu.memory_space<smem>>
    return
  }
  func.func @transform_0(%arg0: i32) -> (i32, i32, i32) {
    %c0_i32 = arith.constant 0 : i32
    %c0_i32_0 = arith.constant 0 : i32
    %c0_i32_1 = arith.constant 0 : i32
    return %arg0, %c0_i32, %c0_i32_0 : i32, i32, i32
  }
  func.func @transform_1(%arg0: i32) -> (i32, i32) {
    %c0_i32 = arith.constant 0 : i32
    %c0_i32_0 = arith.constant 0 : i32
    return %arg0, %c0_i32 : i32, i32
  }
}

</mosaic_0001>

<llo_original>
// kernel: tpu_custom_call.1
$region0: #{tpu_custom_call.1}
  #allocation0 [shape = 'u32[]', space=smem, size = 0x4, offset = 0x4, fixed_abs, tag = 'smem constant byte address 0x4 - core index']
  #allocation1 [shape = 'u32[144,128]{1,0:T(1,128)}', space=vmem, size = 0x12000, scoped, tag = 'internal scratch']
  %s0 = inlined_call_operand.hbm [shape: f32[4,2,128], index: 0, kind: input, shape index: {}]
  %s1 = inlined_call_operand.hbm [shape: f32[1,1], index: 1, kind: output, shape index: {}]
  %s2 = sld [smem:[#allocation0]]
  $region18: #{tpu_custom_call.1} parent=0
    _
  %s4 = ssub.s32 1, %s2
  %s5 = scalar_select 0, %s4, %s2
  $region1: #{tpu_custom_call.1} parent=0
    #allocation2 [shape = 'u8[4096]{0}', space=vmem, size = 0x1000, scoped, tag = 'input window, operand 0, single buffered']
    #allocation3 [shape = 's32[1]{0}', space=sflag, size = 0x4, scoped, tag = 'scoped memory for tpu_custom_call.1']
    #allocation4 [shape = 's32[1]{0}', space=sflag, size = 0x4, scoped, tag = 'scoped memory for tpu_custom_call.1']
    #allocation5 [shape = 'u8[512]{0}', space=smem, size = 0x200, scoped, tag = 'output window, operand 0, single buffered']
    %6 = vsyncpa [#allocation3], 0
    %7 = vsyncpa [#allocation4], 0
    // Predicated region
    $region2: #{tpu_custom_call.1} parent=1 // pred_check
      _
    $region3: #{tpu_custom_call.1} parent=1 // pred_check_branch
      %9 = sbr.rel (0) target = $region5
    $region4: #{tpu_custom_call.1} parent=1 // pred_region
      %s11 = ssub.s32 128, 128
      %12 = vsyncadd [#allocation3], %s11
      %s13 = sshll.u32 [#allocation2], 4
      %s14 = int_to_ptr.vmem [resolvable:$true] %s13
      %19 = dma.hbm_to_vmem [thread:$0]  %s0, 128, %s14, [#allocation3], 32, 32, 2
    $region5: #{tpu_custom_call.1} parent=1 // pred_fallthru
      _
    // Predicated region
    $region6: #{tpu_custom_call.1} parent=1 // pred_check
      _
    $region7: #{tpu_custom_call.1} parent=1 // pred_check_branch
      %21 = sbr.rel (0) target = $region9
    $region8: #{tpu_custom_call.1} parent=1 // pred_region
      %22 = dma.done [#allocation3], 128
    $region9: #{tpu_custom_call.1} parent=1 // pred_fallthru
      _
    %v23 = vld [vmem:[#allocation2] sm:$0x3]
    %v24 = vld [vmem:[#allocation2 + $0x2] sm:$0x3]
    %v25 = vld [vmem:[#allocation2 + $0x4] sm:$0x3]
    %v26 = vld [vmem:[#allocation2 + $0x6] sm:$0x3]
    %v27 = vlaneseq
    %v28 = vand.u32 %v27, 127
    %vm29 = vcmp.lt.s32.totalorder %v28, 0
    %v30 = vsub.s32 0, %v28
    %v31 = vsel %vm29, %v30, %v28
    %v32 = vshrl.u32 %v31, 4
    %v33 = vand.u32 %v31, 15
    %v34 = vsub.s32 0, %v33
    %v35 = vsel %vm29, %v34, %v33
    %vm36 = vcmp.ne.s32.totalorder %v35, 0
    %vm37 = vcmp.lt.s32.totalorder %v35, 0
    %vm38 = vmand %vm37, %vm36
    %v39 = vadd.s32 %v35, 16
    %v40 = vsel %vm38, %v39, %v35
    %vm41 = vcmp.eq.s32.totalorder %v40, 0
    %46 = vrot.lane.b32.xlu0 %v23, 1
    %v47 = vpop.permute.xlu0 %46
    %48 = vrot.lane.b32.xlu0 %v24, 1
    %v49 = vpop.permute.xlu0 %48
    %50 = vrot.lane.b32.xlu0 %v25, 1
    %v51 = vpop.permute.xlu0 %50
    %52 = vrot.lane.b32.xlu0 %v26, 1
    %v53 = vpop.permute.xlu0 %52
    %v58 = vsel %vm41, 0.0, %v47
    %v59 = vsel %vm41, 0.0, %v49
    %v60 = vsel %vm41, 0.0, %v51
    %v61 = vsel %vm41, 0.0, %v53
    %vm62 = vcmp.eq.s32.totalorder %v40, 15
    %63 = vrot.lane.b32.xlu0 %v23, 127
    %v64 = vpop.permute.xlu0 %63
    %65 = vrot.lane.b32.xlu0 %v24, 127
    %v66 = vpop.permute.xlu0 %65
    %67 = vrot.lane.b32.xlu0 %v25, 127
    %v68 = vpop.permute.xlu0 %67
    %69 = vrot.lane.b32.xlu0 %v26, 127
    %v70 = vpop.permute.xlu0 %69
    %v75 = vsel %vm62, 0.0, %v64
    %v76 = vsel %vm62, 0.0, %v66
    %v77 = vsel %vm62, 0.0, %v68
    %v78 = vsel %vm62, 0.0, %v70
    %v79 = vadd.f32 %v58, %v75
    %v80 = vadd.f32 %v59, %v76
    %v81 = vadd.f32 %v60, %v77
    %v82 = vadd.f32 %v61, %v78
    %v83 = vsub.f32 %v75, %v58
    %v84 = vsub.f32 %v76, %v59
    %v85 = vsub.f32 %v77, %v60
    %v86 = vsub.f32 %v78, %v61
    %v87 = vmul.f32 %v23, 2.0
    %v88 = vmul.f32 %v24, 2.0
    %v89 = vmul.f32 %v25, 2.0
    %v90 = vmul.f32 %v26, 2.0
    %v91 = vadd.f32 %v79, %v87
    %v92 = vadd.f32 %v80, %v88
    %v93 = vadd.f32 %v81, %v89
    %v94 = vadd.f32 %v82, %v90
    %v95 = vmul.f32 %v83, 2.0
    %v96 = vmul.f32 %v84, 2.0
    %v97 = vmul.f32 %v85, 2.0
    %v98 = vmul.f32 %v86, 2.0
    %vm99 = vcmp.ge.s32.totalorder %v28, 112
    %v104 = vrot.slane %v83, 1
    %v105 = vrot.slane %v84, 1
    %v106 = vrot.slane %v85, 1
    %v107 = vrot.slane %v86, 1
    %vm112 = vcmask 1040384
    %v113 = vsel %vm112, %v104, 0.0
    %v114 = vsel %vm112, %v105, 0.0
    %v115 = vsel %vm112, %v106, 0.0
    %v116 = vsel %vm112, %v107, 0.0
    %121 = vrot.lane.b32.xlu0 %v113, 112
    %v122 = vpop.permute.xlu0 %121
    %123 = vrot.lane.b32.xlu0 %v114, 112
    %v124 = vpop.permute.xlu0 %123
    %125 = vrot.lane.b32.xlu0 %v115, 112
    %v126 = vpop.permute.xlu0 %125
    %127 = vrot.lane.b32.xlu0 %v116, 112
    %v128 = vpop.permute.xlu0 %127
    %133 = vrot.lane.b32.xlu0 %v83, 112
    %v134 = vpop.permute.xlu0 %133
    %135 = vrot.lane.b32.xlu0 %v84, 112
    %v136 = vpop.permute.xlu0 %135
    %137 = vrot.lane.b32.xlu0 %v85, 112
    %v138 = vpop.permute.xlu0 %137
    %139 = vrot.lane.b32.xlu0 %v86, 112
    %v140 = vpop.permute.xlu0 %139
    %v145 = vsel %vm99, %v122, %v134
    %v146 = vsel %vm99, %v124, %v136
    %v147 = vsel %vm99, %v126, %v138
    %v148 = vsel %vm99, %v128, %v140
    %v149 = vadd.f32 %v95, %v145
    %v150 = vadd.f32 %v96, %v146
    %v151 = vadd.f32 %v97, %v147
    %v152 = vadd.f32 %v98, %v148
    %vm153 = vcmp.lt.s32.totalorder %v28, 16
    %v158 = vrot.slane %v79, 7
    %v159 = vrot.slane %v80, 7
    %v160 = vrot.slane %v81, 7
    %v161 = vrot.slane %v82, 7
    %162 = vrot.lane.b32.xlu0 %v158, 16
    %v163 = vpop.permute.xlu0 %162
    %164 = vrot.lane.b32.xlu0 %v159, 16
    %v165 = vpop.permute.xlu0 %164
    %166 = vrot.lane.b32.xlu0 %v160, 16
    %v167 = vpop.permute.xlu0 %166
    %168 = vrot.lane.b32.xlu0 %v161, 16
    %v169 = vpop.permute.xlu0 %168
    %v174 = vsel %vm112, 0.0, %v163
    %v175 = vsel %vm112, 0.0, %v165
    %v176 = vsel %vm112, 0.0, %v167
    %v177 = vsel %vm112, 0.0, %v169
    %178 = vrot.lane.b32.xlu0 %v79, 16
    %v179 = vpop.permute.xlu0 %178
    %180 = vrot.lane.b32.xlu0 %v80, 16
    %v181 = vpop.permute.xlu0 %180
    %182 = vrot.lane.b32.xlu0 %v81, 16
    %v183 = vpop.permute.xlu0 %182
    %184 = vrot.lane.b32.xlu0 %v82, 16
    %v185 = vpop.permute.xlu0 %184
    %v190 = vsel %vm153, %v174, %v179
    %v191 = vsel %vm153, %v175, %v181
    %v192 = vsel %vm153, %v176, %v183
    %v193 = vsel %vm153, %v177, %v185
    %v194 = vsub.f32 %v149, %v190
    %v195 = vsub.f32 %v150, %v191
    %v196 = vsub.f32 %v151, %v192
    %v197 = vsub.f32 %v152, %v193
    %v202 = vrot.slane %v91, 1
    %v203 = vrot.slane %v92, 1
    %v204 = vrot.slane %v93, 1
    %v205 = vrot.slane %v94, 1
    %v210 = vsel %vm112, %v202, 0.0
    %v211 = vsel %vm112, %v203, 0.0
    %v212 = vsel %vm112, %v204, 0.0
    %v213 = vsel %vm112, %v205, 0.0
    %218 = vrot.lane.b32.xlu0 %v210, 112
    %v219 = vpop.permute.xlu0 %218
    %220 = vrot.lane.b32.xlu0 %v211, 112
    %v221 = vpop.permute.xlu0 %220
    %222 = vrot.lane.b32.xlu0 %v212, 112
    %v223 = vpop.permute.xlu0 %222
    %224 = vrot.lane.b32.xlu0 %v213, 112
    %v225 = vpop.permute.xlu0 %224
    %230 = vrot.lane.b32.xlu0 %v91, 112
    %v231 = vpop.permute.xlu0 %230
    %232 = vrot.lane.b32.xlu0 %v92, 112
    %v233 = vpop.permute.xlu0 %232
    %234 = vrot.lane.b32.xlu0 %v93, 112
    %v235 = vpop.permute.xlu0 %234
    %236 = vrot.lane.b32.xlu0 %v94, 112
    %v237 = vpop.permute.xlu0 %236
    %v242 = vsel %vm99, %v219, %v231
    %v243 = vsel %vm99, %v221, %v233
    %v244 = vsel %vm99, %v223, %v235
    %v245 = vsel %vm99, %v225, %v237
    %v246 = vrot.slane %v91, 7
    %v247 = vrot.slane %v92, 7
    %v248 = vrot.slane %v93, 7
    %v249 = vrot.slane %v94, 7
    %250 = vrot.lane.b32.xlu0 %v246, 16
    %v251 = vpop.permute.xlu0 %250
    %252 = vrot.lane.b32.xlu0 %v247, 16
    %v253 = vpop.permute.xlu0 %252
    %254 = vrot.lane.b32.xlu0 %v248, 16
    %v255 = vpop.permute.xlu0 %254
    %256 = vrot.lane.b32.xlu0 %v249, 16
    %v257 = vpop.permute.xlu0 %256
    %v262 = vsel %vm112, 0.0, %v251
    %v263 = vsel %vm112, 0.0, %v253
    %v264 = vsel %vm112, 0.0, %v255
    %v265 = vsel %vm112, 0.0, %v257
    %266 = vrot.lane.b32.xlu0 %v91, 16
    %v267 = vpop.permute.xlu0 %266
    %268 = vrot.lane.b32.xlu0 %v92, 16
    %v269 = vpop.permute.xlu0 %268
    %270 = vrot.lane.b32.xlu0 %v93, 16
    %v271 = vpop.permute.xlu0 %270
    %272 = vrot.lane.b32.xlu0 %v94, 16
    %v273 = vpop.permute.xlu0 %272
    %v278 = vsel %vm153, %v262, %v267
    %v279 = vsel %vm153, %v263, %v269
    %v280 = vsel %vm153, %v264, %v271
    %v281 = vsel %vm153, %v265, %v273
    %v282 = vsub.f32 %v242, %v278
    %v283 = vsub.f32 %v243, %v279
    %v284 = vsub.f32 %v244, %v280
    %v285 = vsub.f32 %v245, %v281
    %v286 = vmul.f32 %v194, %v194
    %v287 = vmul.f32 %v195, %v195
    %v288 = vmul.f32 %v196, %v196
    %v289 = vmul.f32 %v197, %v197
    %v290 = vmul.f32 %v282, %v282
    %v291 = vmul.f32 %v283, %v283
    %v292 = vmul.f32 %v284, %v284
    %v293 = vmul.f32 %v285, %v285
    %v294 = vadd.f32 %v286, %v290
    %v295 = vadd.f32 %v287, %v291
    %v296 = vadd.f32 %v288, %v292
    %v297 = vadd.f32 %v289, %v293
    %v298 = vrsqrt.pop %v294
    %v299 = vmul.f32 %v294, %v298
    %vm300 = vcmp.eq.f32.partialorder %v294, inf
    %v301 = vsel %vm300, %v294, %v299
    %vm302 = vcmp.eq.f32.partialorder %v294, 0.0
    %v303 = vand.u32 %v294, 2147483648
    %v304 = vsel %vm302, %v303, %v301
    %v305 = vrsqrt.pop %v295
    %v306 = vmul.f32 %v295, %v305
    %vm307 = vcmp.eq.f32.partialorder %v295, inf
    %v308 = vsel %vm307, %v295, %v306
    %vm309 = vcmp.eq.f32.partialorder %v295, 0.0
    %v310 = vand.u32 %v295, 2147483648
    %v311 = vsel %vm309, %v310, %v308
    %v312 = vrsqrt.pop %v296
    %v313 = vmul.f32 %v296, %v312
    %vm314 = vcmp.eq.f32.partialorder %v296, inf
    %v315 = vsel %vm314, %v296, %v313
    %vm316 = vcmp.eq.f32.partialorder %v296, 0.0
    %v317 = vand.u32 %v296, 2147483648
    %v318 = vsel %vm316, %v317, %v315
    %v319 = vrsqrt.pop %v297
    %v320 = vmul.f32 %v297, %v319
    %vm321 = vcmp.eq.f32.partialorder %v297, inf
    %v322 = vsel %vm321, %v297, %v320
    %vm323 = vcmp.eq.f32.partialorder %v297, 0.0
    %v324 = vand.u32 %v297, 2147483648
    %v325 = vsel %vm323, %v324, %v322
    %vm326 = vcmask 1041408
    %v327 = vsel %vm326, %v304, 0.0
    %v328 = vsel %vm326, %v311, 0.0
    %v329 = vadd.f32 %v327, %v328
    %v330 = vsel %vm326, %v318, 0.0
    %v331 = vadd.f32 %v329, %v330
    %v332 = vsel %vm326, %v325, 0.0
    %v333 = vadd.f32 %v331, %v332
    %334 = vadd.xlane.f32.xlu0 %v333
    %v335 = vpop.xlane.xlu0 %334
    %v336 = vrot.slane %v335, 4
    %v337 = vadd.f32 %v335, %v336
    %v338 = vrot.slane %v337, 2
    %v339 = vadd.f32 %v337, %v338
    %v340 = vrot.slane %v339, 1
    %v341 = vadd.f32 %v339, %v340
    %s342 = vtos %v341
    %s343 = scalar_lea.smem [#allocation5], 0
    %344 = sst [smem:[%s343]] %s342
    // Predicated region
    $region10: #{tpu_custom_call.1} parent=1 // pred_check
      _
    $region11: #{tpu_custom_call.1} parent=1 // pred_check_branch
      %346 = sbr.rel (0) target = $region13
    $region12: #{tpu_custom_call.1} parent=1 // pred_region
      %s348 = ssub.s32 16, 16
      %349 = vsyncadd [#allocation4], %s348
      %352 = dma.smem_to_hbm [#allocation5], 16, %s1, [#allocation4]
    $region13: #{tpu_custom_call.1} parent=1 // pred_fallthru
      _
    // Predicated region
    $region14: #{tpu_custom_call.1} parent=1 // pred_check
      _
    $region15: #{tpu_custom_call.1} parent=1 // pred_check_branch
      %354 = sbr.rel (0) target = $region17
    $region16: #{tpu_custom_call.1} parent=1 // pred_region
      %355 = dma.done [#allocation4], 16
    $region17: #{tpu_custom_call.1} parent=1 // pred_fallthru
      _
    %356 = sfence
    %357 = vsyncpa [#allocation3], 1
    %358 = vsyncpa [#allocation4], 1

</llo_original>
